<compile_context>
chip_gen: v5e
topology: v5e:2x2
jax: 0.10.0
libtpu: 0.0.40
codegen_flags: <defaults>
</compile_context>

<pallas_src>
import math

import jax
import jax.numpy as jnp
from jax.experimental import pallas as pl
from jax.experimental.pallas import tpu as pltpu

_EPS = 1e-12  # matches torch.nn.functional.normalize default eps
_LANE = 128


def _hypersphere_kernel(scale_ref, x_ref, o_ref):
    # x_ref block: (C, TILE_HW).  Channels on the sublane axis, spatial tile
    # on the 128-lane axis.  scale_ref: (1,) f32 in SMEM = 1/sqrt(radius^2).
    xf = x_ref[...].astype(jnp.float32)
    sq_sum = jnp.sum(xf * xf, axis=0, keepdims=True)              # (1, TILE) f32
    # EUP rsqrt; fold 1/sqrt(squared_radius) into the per-column scale.
    scale = jax.lax.rsqrt(jnp.maximum(sq_sum, _EPS * _EPS)) * scale_ref[0]
    # Final multiply stays in f32, downcast once (matches f32-math reference).
    o_ref[...] = (xf * scale).astype(o_ref.dtype)


def _vmem_capacity_bytes() -> int:
    try:
        info = pltpu.get_tpu_info()
        cap = getattr(info, "vmem_capacity_bytes", None)
        if cap:
            return int(cap)
    except Exception:
        pass
    return 64 * 1024 * 1024  # conservative: v7x per-TensorCore VMEM


def _pick_tiling(n: int, c: int, hw: int, itemsize: int, vmem_cap: int):
    """Choose (tile_hw, hw_pad, num_tiles, vmem_limit) for lane-dense tiling."""
    hw128 = ((hw + _LANE - 1) // _LANE) * _LANE        # spatial padded to lanes

    # Per-pipeline-buffer budget, generation aware, clamped to a sane range.
    per_buffer_budget = max(2 * 1024 * 1024, min(12 * 1024 * 1024, vmem_cap // 12))

    bytes_per_col = c * itemsize
    max_tile = max(_LANE, (per_buffer_budget // bytes_per_col) // _LANE * _LANE)
    max_tile = min(max_tile, hw128)

    if hw128 <= max_tile:
        tile_hw, hw_pad = hw128, hw128
    else:
        # Prefer a 128-multiple divisor of hw128 (no extra padding).
        best = _LANE
        for t in range(max_tile, _LANE - 1, -_LANE):
            if hw128 % t == 0:
                best = t
                break
        if best >= max_tile // 2:
            tile_hw, hw_pad = best, hw128
        else:
            # Divisor search degraded badly (e.g. hw128 = 128*prime): take the
            # budget-limited tile and pad hw up to a multiple of it instead of
            # accepting tiny tiles or masked stores.
            tile_hw = max_tile
            hw_pad = ((hw128 + tile_hw - 1) // tile_hw) * tile_hw

    num_tiles = hw_pad // tile_hw

    # v7x has 2 TensorCores: guarantee >=2 parallel grid steps when possible.
    if n * num_tiles < 2 and hw_pad >= 2 * _LANE:
        hw_pad = ((hw_pad + 2 * _LANE - 1) // (2 * _LANE)) * (2 * _LANE)
        tile_hw = hw_pad // 2
        num_tiles = 2

    # Explicit VMEM limit: 2 specs x 2 pipeline buffers x block, plus the
    # full-block f32 intermediate for sub-f32 inputs, plus headroom.
    block_bytes = c * tile_hw * itemsize
    f32_extra = c * tile_hw * 4 if itemsize < 4 else 0
    footprint = 4 * block_bytes + f32_extra
    vmem_limit = max(footprint + 8 * 1024 * 1024, 32 * 1024 * 1024)
    vmem_limit = min(vmem_limit, vmem_cap)

    return tile_hw, hw_pad, num_tiles, vmem_limit


def hypersphere(x: jax.Array, squared_radius: float = 1.0) -> jax.Array:
    """Pallas TPU implementation of Hypersphere.forward for NCHW inputs."""
    n, c, h, w = x.shape
    hw = h * w
    inv_sqrt_r = jnp.full((1,), 1.0 / math.sqrt(float(squared_radius)),
                          dtype=jnp.float32)

    tile_hw, hw_pad, num_tiles, vmem_limit = _pick_tiling(
        n, c, hw, x.dtype.itemsize, _vmem_capacity_bytes())

    # Lane-dense view: (N, C, H*W); pad spatial axis so every block is full.
    x3 = x.reshape(n, c, hw)
    if hw_pad != hw:
        x3 = jnp.pad(x3, ((0, 0), (0, 0), (0, hw_pad - hw)))

    out3 = pl.pallas_call(
        _hypersphere_kernel,
        out_shape=jax.ShapeDtypeStruct((n, c, hw_pad), x.dtype),
        grid_spec=pltpu.PrefetchScalarGridSpec(
            num_scalar_prefetch=0,
            grid=(n, num_tiles),
            in_specs=[
                # Runtime scalar 1/sqrt(squared_radius): lives in SMEM, no
                # recompile per radius value.
                pl.BlockSpec(memory_space=pltpu.MemorySpace.SMEM),
                pl.BlockSpec((pl.Squeezed(), c, tile_hw),
                             lambda i, j: (i, 0, j)),
            ],
            out_specs=pl.BlockSpec((pl.Squeezed(), c, tile_hw),
                                   lambda i, j: (i, 0, j)),
        ),
        compiler_params=pltpu.CompilerParams(
            dimension_semantics=("parallel", "parallel"),
            vmem_limit_bytes=int(vmem_limit),
        ),
    )(inv_sqrt_r, x3)

    if hw_pad != hw:
        out3 = out3[..., :hw]
    return out3.reshape(n, c, h, w)


def _reference(x: jax.Array, squared_radius: float = 1.0) -> jax.Array:
    # Pure-JAX reference of F.normalize(x, dim=1) / sqrt(squared_radius)
    norm = jnp.sqrt(jnp.sum(x.astype(jnp.float32) ** 2, axis=1, keepdims=True))
    denom = jnp.maximum(norm, _EPS)
    out = x.astype(jnp.float32) / denom / math.sqrt(float(squared_radius))
    return out.astype(x.dtype)


if __name__ == "__main__":
    key = jax.random.PRNGKey(0)
    x = jax.random.normal(key, (2, 4, 16, 16), dtype=jnp.float32)

    out = hypersphere(x, squared_radius=1.0)
    out = jax.block_until_ready(out)

    ref = _reference(x, squared_radius=1.0)
    assert out.shape == x.shape and out.dtype == x.dtype
    assert jnp.allclose(out, ref, atol=1e-5, rtol=1e-5)

    print("KERNEL_OK")
</pallas_src>

<mosaic_0001>
module attributes {stable_mosaic.version = 11 : i64} {
  func.func @_hypersphere_kernel(%arg0: i32, %arg1: i32, %arg2: memref<1xf32, #tpu.memory_space<smem>>, %arg3: memref<1x4x256xf32, #tpu.memory_space<vmem>>, %arg4: memref<1x4x256xf32, #tpu.memory_space<vmem>>) attributes {dimension_semantics = [#tpu.dimension_semantics<parallel>, #tpu.dimension_semantics<parallel>], iteration_bounds = array<i64: 2, 1>, scalar_prefetch = 0 : i64, scratch_operands = 0 : i64, tpu.core_type = #tpu.core_type<tc>, window_params = [{transform_indices = @transform_0, window_bounds = array<i64: 1>}, {transform_indices = @transform_1, window_bounds = array<i64: 1, 4, 256>}, {transform_indices = @transform_2, window_bounds = array<i64: 1, 4, 256>}]} {
    %c0 = arith.constant 0 : index
    %c0_0 = arith.constant 0 : index
    %c0_1 = arith.constant 0 : index
    %0 = vector.load %arg3[%c0, %c0_0, %c0_1] : memref<1x4x256xf32, #tpu.memory_space<vmem>>, vector<1x4x256xf32>
    %1 = vector.shape_cast %0 : vector<1x4x256xf32> to vector<4x256xf32>
    %2 = arith.mulf %1, %1 : vector<4x256xf32>
    %cst = arith.constant dense<0.000000e+00> : vector<256xf32>
    %3 = vector.multi_reduction <add>, %2, %cst [0] : vector<4x256xf32> to vector<256xf32>
    %4 = vector.shape_cast %3 : vector<256xf32> to vector<1x256xf32>
    %cst_2 = arith.constant 1.000000e-24 : f32
    %5 = vector.broadcast %cst_2 : f32 to vector<1x256xf32>
    %6 = arith.maximumf %4, %5 : vector<1x256xf32>
    %7 = math.rsqrt %6 : vector<1x256xf32>
    %c0_3 = arith.constant 0 : index
    %8 = memref.load %arg2[%c0_3] : memref<1xf32, #tpu.memory_space<smem>>
    %9 = vector.broadcast %8 : f32 to vector<1x256xf32>
    %10 = arith.mulf %7, %9 : vector<1x256xf32>
    %11 = vector.broadcast %10 : vector<1x256xf32> to vector<4x256xf32>
    %12 = arith.mulf %1, %11 : vector<4x256xf32>
    %c0_4 = arith.constant 0 : index
    %c0_5 = arith.constant 0 : index
    %c0_6 = arith.constant 0 : index
    %13 = vector.load %arg4[%c0_4, %c0_5, %c0_6] : memref<1x4x256xf32, #tpu.memory_space<vmem>>, vector<1x4x256xf32>
    %14 = vector.shape_cast %13 : vector<1x4x256xf32> to vector<4x256xf32>
    %15 = vector.shape_cast %12 : vector<4x256xf32> to vector<1x4x256xf32>
    tpu.vector_store %arg4[%c0_4, %c0_5, %c0_6], %15 {strides = array<i32>} : memref<1x4x256xf32, #tpu.memory_space<vmem>>, vector<1x4x256xf32>,
    return
  }
  func.func @transform_0(%arg0: i32, %arg1: i32) -> i32 {
    %c0_i32 = arith.constant 0 : i32
    %c0_i32_0 = arith.constant 0 : i32
    return %c0_i32 : i32
  }
  func.func @transform_1(%arg0: i32, %arg1: i32) -> (i32, i32, i32) {
    %c0_i32 = arith.constant 0 : i32
    %c0_i32_0 = arith.constant 0 : i32
    return %arg0, %c0_i32, %arg1 : i32, i32, i32
  }
  func.func @transform_2(%arg0: i32, %arg1: i32) -> (i32, i32, i32) {
    %c0_i32 = arith.constant 0 : i32
    %c0_i32_0 = arith.constant 0 : i32
    return %arg0, %c0_i32, %arg1 : i32, i32, i32
  }
}

</mosaic_0001>

<llo_original>
// kernel: tpu_custom_call.1
$region0: #{tpu_custom_call.1}
  #allocation0 [shape = 'u32[]', space=smem, size = 0x4, offset = 0x4, fixed_abs, tag = 'smem constant byte address 0x4 - core index']
  #allocation1 [shape = 'u32[72,128]{1,0:T(1,128)}', space=vmem, size = 0x9000, scoped, tag = 'internal scratch']
  #allocation2 [shape = 'f32[1]{0:T(128)S(6)}', space=smem, size = 0x200, scoped, tag = 'scoped memory for tpu_custom_call.1']
  %s0 = inlined_call_operand.<no memory space> [shape: f32[1], index: 0, kind: input, shape index: {}]
  %s1 = inlined_call_operand.hbm [shape: f32[2,4,256], index: 1, kind: input, shape index: {}]
  %s2 = inlined_call_operand.hbm [shape: f32[2,4,256], index: 2, kind: output, shape index: {}]
  %s3 = sld [smem:[#allocation0]]
  $region45: #{tpu_custom_call.1} parent=0
    _
  %s5 = ssub.s32 1, %s3
  %s6 = scalar_select 0, %s5, %s3
  %7 = sst [smem:[#allocation2]] %s0
  $region1: #{tpu_custom_call.1} parent=0
    #allocation3 [shape = 'u8[8192]{0}', space=vmem, size = 0x2000, scoped, tag = 'input window, operand 1']
    #allocation4 [shape = 's32[2]{0}', space=sflag, size = 0x8, scoped, tag = 'scoped memory for tpu_custom_call.1']
    #allocation5 [shape = 's32[2]{0}', space=sflag, size = 0x8, scoped, tag = 'scoped memory for tpu_custom_call.1']
    #allocation6 [shape = 'u8[8192]{0}', space=vmem, size = 0x2000, scoped, tag = 'output window, operand 0']
    %8 = vsyncpa [#allocation4], 0
    %s9 = scalar_lea.sflag [#allocation4], 1
    %10 = vsyncpa %s9, 0
    %11 = vsyncpa [#allocation5], 0
    %s12 = scalar_lea.sflag [#allocation5], 1
    %13 = vsyncpa %s12, 0
    loop: start=0, step=1, limit=4
    $region2: #{tpu_custom_call.1} parent=1 // loop_pre_header
      _
    $region3: #{tpu_custom_call.1} parent=1 // loop_header
      %s15 = sphi 0, %s19
      %p16 = scmp.ge.s32.totalorder %s15, 4
      %s22 = sphi 0, %s34
      %s23 = sphi 0, %s30
      %s24 = sphi 0, %s22
      %s25 = sphi 0, %s23
      %s26 = sphi 0, %s24
      %s27 = sphi 0, %s25
      %s35 = sphi 0, %s35
      %s37 = sphi 0, %s35
      %s38 = sphi 0, %s37
      %s52 = sphi 0, %s38
      %s60 = sphi 0, %s62
      %s63 = sphi 0, %s60
      %s64 = sphi 0, %s63
      %s80 = sphi 0, %s64
      %s88 = sphi 0, %s90
      %s91 = sphi 0, %s88
      %s92 = sphi 0, %s91
      %s108 = sphi 0, %s92
    $region4: #{tpu_custom_call.1} parent=1 // loop_header_branch
      %18 = sbr.rel (%p16) target = $region8
    $region5: #{tpu_custom_call.1} parent=1 // loop_body
      %s20 = ssub.s32 %s15, 1
      %s21 = ssub.s32 %s15, 2
      %s28 = sadd.s32 1, %s23
      %p29 = scmp.ge.s32.totalorder %s28, 1
      %s30 = scalar_select %p29, 0, %s28
      %s31 = sadd.s32 1, %s22
      %s32 = scalar_select %p29, %s31, %s22
      %p33 = scmp.ge.s32.totalorder %s32, 2
      %s34 = scalar_select %p33, 0, %s32
      %s36 = sadd.s32 %s35, 1
      %p39 = scmp.eq.s32.totalorder %s15, 1
      %p40 = scmp.ne.s32.totalorder %s35, %s37
      %p41 = scmp.eq.s32.totalorder %s15, 0
      %p42 = por %p40, %p41
      %p43 = scmp.ne.s32.totalorder %s35, %s37
      %p44 = scmp.eq.s32.totalorder %s20, 1
      %p45 = por %p43, %p44
      %p46 = scmp.ne.s32.totalorder %s37, %s38
      %p47 = scmp.eq.s32.totalorder %s20, 0
      %p48 = por %p46, %p47
      %p49 = scmp.ne.s32.totalorder %s37, %s38
      %p50 = scmp.eq.s32.totalorder %s21, 1
      %p51 = por %p49, %p50
      %p53 = scmp.ne.s32.totalorder %s38, %s52
      %p54 = scmp.eq.s32.totalorder %s21, 0
      %p55 = por %p53, %p54
      %s56 = ssub.s32 %s22, %s34
      %s57 = ssub.s32 %s23, %s30
      %s58 = sor.u32 %s56, %s57
      %p59 = scmp.eq.s32.totalorder %s58, 0
      %s61 = sadd.s32 %s60, 1
      %s62 = scalar_select %p59, %s60, %s61
      %p65 = pneg %p59
      %p66 = scmp.eq.s32.totalorder %s15, 1
      %p67 = por %p65, %p66
      %p68 = scmp.ne.s32.totalorder %s60, %s63
      %p69 = scmp.eq.s32.totalorder %s15, 0
      %p70 = por %p68, %p69
      %p71 = scmp.ne.s32.totalorder %s60, %s63
      %p72 = scmp.eq.s32.totalorder %s20, 1
      %p73 = por %p71, %p72
      %p74 = scmp.ne.s32.totalorder %s63, %s64
      %p75 = scmp.eq.s32.totalorder %s20, 0
      %p76 = por %p74, %p75
      %p77 = scmp.ne.s32.totalorder %s63, %s64
      %p78 = scmp.eq.s32.totalorder %s21, 1
      %p79 = por %p77, %p78
      %p81 = scmp.ne.s32.totalorder %s64, %s80
      %p82 = scmp.eq.s32.totalorder %s21, 0
      %p83 = por %p81, %p82
      %s84 = ssub.s32 %s22, %s34
      %s85 = ssub.s32 %s23, %s30
      %s86 = sor.u32 %s84, %s85
      %p87 = scmp.eq.s32.totalorder %s86, 0
      %s89 = sadd.s32 %s88, 1
      %s90 = scalar_select %p87, %s88, %s89
      %p93 = pneg %p87
      %p94 = scmp.eq.s32.totalorder %s15, 1
      %p95 = por %p93, %p94
      %p96 = scmp.ne.s32.totalorder %s88, %s91
      %p97 = scmp.eq.s32.totalorder %s15, 0
      %p98 = por %p96, %p97
      %p99 = scmp.ne.s32.totalorder %s88, %s91
      %p100 = scmp.eq.s32.totalorder %s20, 1
      %p101 = por %p99, %p100
      %p102 = scmp.ne.s32.totalorder %s91, %s92
      %p103 = scmp.eq.s32.totalorder %s20, 0
      %p104 = por %p102, %p103
      %p105 = scmp.ne.s32.totalorder %s91, %s92
      %p106 = scmp.eq.s32.totalorder %s21, 1
      %p107 = por %p105, %p106
      %p109 = scmp.ne.s32.totalorder %s92, %s108
      %p110 = scmp.eq.s32.totalorder %s21, 0
      %p111 = por %p109, %p110
      %p112 = scmp.le.s32.totalorder 1, %s15
      %p113 = scmp.lt.s32.totalorder %s15, 3
      %p114 = pnand %p112, %p113
      %p115 = pneg %p114
      // Predicated region
      $region9: #{tpu_custom_call.1} parent=5 // pred_check
        _
      $region10: #{tpu_custom_call.1} parent=5 // pred_check_branch
        %117 = sbr.rel (%p114) target = $region12
      $region11: #{tpu_custom_call.1} parent=5 // pred_region
        %s118 = ssub.s32 %s15, 1
        // Predicated region
        $region13: #{tpu_custom_call.1} parent=11 // pred_check
          %p119 = pneg %p48
        $region14: #{tpu_custom_call.1} parent=11 // pred_check_branch
          %121 = sbr.rel (%p119) target = $region16
        $region15: #{tpu_custom_call.1} parent=11 // pred_region
          _
        $region16: #{tpu_custom_call.1} parent=11 // pred_fallthru
          _
      $region12: #{tpu_custom_call.1} parent=5 // pred_fallthru
        _
      %p122 = scmp.lt.s32.totalorder %s15, 2
      // Predicated region
      $region17: #{tpu_custom_call.1} parent=5 // pred_check
        %p123 = pneg %p122
      $region18: #{tpu_custom_call.1} parent=5 // pred_check_branch
        %125 = sbr.rel (%p123) target = $region20
      $region19: #{tpu_custom_call.1} parent=5 // pred_region
        // Predicated region
        $region21: #{tpu_custom_call.1} parent=19 // pred_check
          %p126 = pneg %p70
        $region22: #{tpu_custom_call.1} parent=19 // pred_check_branch
          %128 = sbr.rel (%p126) target = $region24
        $region23: #{tpu_custom_call.1} parent=19 // pred_region
          %s129 = sand.u32 %s60, 1
          %s130 = scalar_lea.sflag [#allocation4], %s129
          %s131 = sand.u32 %s60, 1
          %s132 = smul.addr %s131, 8
          %s133 = scalar_lea.vmem [#allocation3], %s132
          %s134 = smul.u32 2, %s23
          %136 = vsyncadd %s130, 0
          %s137 = smul.addr %s22, 2
          %s138 = sadd.s32 %s134, %s137
          %s139 = smul.addr %s138, 4
          %s140 = scalar_lea.hbm %s1, %s139
          %s142 = sshll.u32 %s140, 4
          %s143 = int_to_ptr.hbm [resolvable:$true] %s142
          %s144 = sshll.u32 %s133, 4
          %s145 = int_to_ptr.vmem [resolvable:$true] %s144
          %147 = dma.hbm_to_vmem [thread:$0]  %s143, 128, %s145, %s130
        $region24: #{tpu_custom_call.1} parent=19 // pred_fallthru
          _
      $region20: #{tpu_custom_call.1} parent=5 // pred_fallthru
        _
      %p148 = scmp.le.s32.totalorder 1, %s15
      %p149 = scmp.lt.s32.totalorder %s15, 3
      %p150 = pnand %p148, %p149
      %p151 = pneg %p150
      // Predicated region
      $region25: #{tpu_custom_call.1} parent=5 // pred_check
        _
      $region26: #{tpu_custom_call.1} parent=5 // pred_check_branch
        %153 = sbr.rel (%p150) target = $region28
      $region27: #{tpu_custom_call.1} parent=5 // pred_region
        %s154 = ssub.s32 %s15, 1
        %s155 = sand.u32 %s63, 1
        %s156 = scalar_lea.sflag [#allocation4], %s155
        %s157 = sand.u32 %s63, 1
        %s158 = smul.addr %s157, 8
        %s159 = scalar_lea.vmem [#allocation3], %s158
        // Predicated region
        $region29: #{tpu_custom_call.1} parent=27 // pred_check
          %p160 = pneg %p76
        $region30: #{tpu_custom_call.1} parent=27 // pred_check_branch
          %162 = sbr.rel (%p160) target = $region32
        $region31: #{tpu_custom_call.1} parent=27 // pred_region
          %164 = dma.done %s156, 128
        $region32: #{tpu_custom_call.1} parent=27 // pred_fallthru
          _
        %p165 = pneg %p48
        %p166 = pneg %p45
        %s167 = sand.u32 %s63, 1
        %s168 = scalar_lea.sflag [#allocation4], %s167
        %s169 = sand.u32 %s63, 1
        %s170 = smul.addr %s169, 8
        %s171 = scalar_lea.vmem [#allocation3], %s170
        %p172 = pneg %p76
        %p173 = pneg %p73
        %p174 = pneg %p104
        %p175 = pneg %p101
        %s176 = sand.u32 %s91, 1
        %s177 = scalar_lea.sflag [#allocation5], %s176
        %s178 = sand.u32 %s91, 1
        %s179 = smul.addr %s178, 8
        %s180 = scalar_lea.vmem [#allocation6], %s179
        %s181 = smul.u32 2, %s25
        %s182 = smul.u32 2, %s25
        %v183 = vld [vmem:[%s159] sm:$0xff]
        %v184 = vmul.f32 %v183, %v183
        %186 = vst [vmem:[#allocation1] ss:$2 sm:$0xff] %v184
        %v187 = vld.sshfl [vmem:[#allocation1] sm:$0xff pattern:$0x75316420]
        %v188 = vld.sshfl [vmem:[#allocation1 + $0x8] sm:$0xff pattern:$0x75316420]
        %vm191 = vcmask 1043456
        %v192 = vsel %vm191, %v187, 0.0
        %v193 = vrot.slane %v192, 4
        %v194 = vadd.f32 %v192, %v193
        %v195 = vrot.slane %v194, 2
        %v196 = vadd.f32 %v194, %v195
        %v197 = vrot.slane %v196, 1
        %v198 = vadd.f32 %v196, %v197
        %v199 = vsel %vm191, %v188, 0.0
        %v200 = vrot.slane %v199, 4
        %v201 = vadd.f32 %v199, %v200
        %v202 = vrot.slane %v201, 2
        %v203 = vadd.f32 %v201, %v202
        %v204 = vrot.slane %v203, 1
        %v205 = vadd.f32 %v203, %v204
        %v206 = vmax.f32 %v198, 1e-24
        %v207 = vmax.f32 %v205, 1e-24
        %v208 = vrsqrt.pop %v206
        %v209 = vmul.f32 %v208, %v206
        %v210 = vmul.f32 %v209, %v208
        %v211 = vmul.f32 0.5, %v210
        %v212 = vsub.f32 1.5, %v211
        %v213 = vmul.f32 %v208, %v212
        %vm214 = vweird.f32 %v206
        %vm215 = vweird.f32 %v208
        %vm216 = vmor %vm214, %vm215
        %v217 = vsel %vm216, %v208, %v213
        %v218 = vrsqrt.pop %v207
        %v219 = vmul.f32 %v218, %v207
        %v220 = vmul.f32 %v219, %v218
        %v221 = vmul.f32 0.5, %v220
        %v222 = vsub.f32 1.5, %v221
        %v223 = vmul.f32 %v218, %v222
        %vm224 = vweird.f32 %v207
        %vm225 = vweird.f32 %v218
        %vm226 = vmor %vm224, %vm225
        %v227 = vsel %vm226, %v218, %v223
        %s228 = sld [smem:[#allocation2]]
        %v229 = vstv %s228
        %v230 = vmul.f32 %v217, %v229
        %v231 = vmul.f32 %v227, %v229
        %v234 = vrot.slane %v231, 4
        %v235 = vsel %vm191, %v230, %v234
        %v237 = vmul.f32 %v183, %v235
        %238 = vst [vmem:[%s180] sm:$0xff] %v237
        %s239 = sand.u32 %s91, 1
        %s240 = scalar_lea.sflag [#allocation5], %s239
        %s241 = sand.u32 %s91, 1
        %s242 = smul.addr %s241, 8
        %s243 = scalar_lea.vmem [#allocation6], %s242
        // Predicated region
        $region33: #{tpu_custom_call.1} parent=27 // pred_check
          %p244 = pneg %p101
        $region34: #{tpu_custom_call.1} parent=27 // pred_check_branch
          %246 = sbr.rel (%p244) target = $region36
        $region35: #{tpu_custom_call.1} parent=27 // pred_region
          %s247 = smul.u32 2, %s25
          %249 = vsyncadd %s240, 0
          %s250 = smul.addr %s24, 2
          %s251 = sadd.s32 %s247, %s250
          %s252 = smul.addr %s251, 4
          %s253 = scalar_lea.hbm %s2, %s252
          %s255 = sshll.u32 %s243, 4
          %s256 = int_to_ptr.vmem [resolvable:$true] %s255
          %s257 = sshll.u32 %s253, 4
          %s258 = int_to_ptr.hbm [resolvable:$true] %s257
          %260 = dma.vmem_to_hbm [thread:$0]  %s256, 128, %s258, %s240
        $region36: #{tpu_custom_call.1} parent=27 // pred_fallthru
          _
      $region28: #{tpu_custom_call.1} parent=5 // pred_fallthru
        _
      %p261 = scmp.le.s32.totalorder 2, %s15
      // Predicated region
      $region37: #{tpu_custom_call.1} parent=5 // pred_check
        %p262 = pneg %p261
      $region38: #{tpu_custom_call.1} parent=5 // pred_check_branch
        %264 = sbr.rel (%p262) target = $region40
      $region39: #{tpu_custom_call.1} parent=5 // pred_region
        %s265 = ssub.s32 %s15, 2
        // Predicated region
        $region41: #{tpu_custom_call.1} parent=39 // pred_check
          %p266 = pneg %p107
        $region42: #{tpu_custom_call.1} parent=39 // pred_check_branch
          %268 = sbr.rel (%p266) target = $region44
        $region43: #{tpu_custom_call.1} parent=39 // pred_region
          %s269 = sand.u32 %s92, 1
          %s270 = scalar_lea.sflag [#allocation5], %s269
          %s271 = sand.u32 %s92, 1
          %s272 = smul.addr %s271, 8
          %s273 = scalar_lea.vmem [#allocation6], %s272
          %275 = dma.done %s270, 128
        $region44: #{tpu_custom_call.1} parent=39 // pred_fallthru
          _
      $region40: #{tpu_custom_call.1} parent=5 // pred_fallthru
        _
    $region6: #{tpu_custom_call.1} parent=1 // loop_footer
      %s19 = sadd.s32 1, %s15
    $region7: #{tpu_custom_call.1} parent=1 // loop_footer_branch
      %14 = sbr.rel target = $region3
    $region8: #{tpu_custom_call.1} parent=1 // loop_exit
      _
    %276 = vsyncpa [#allocation4], 1
    %s277 = scalar_lea.sflag [#allocation4], 1
    %278 = vsyncpa %s277, 1
    %279 = vsyncpa [#allocation5], 1
    %s280 = scalar_lea.sflag [#allocation5], 1
    %281 = vsyncpa %s280, 1

</llo_original>
